<compile_context>
chip_gen: v7x
topology: tpu7x:2x2x1
jax: 0.10.0
libtpu: 0.0.40
codegen_flags: <defaults>
</compile_context>

<pallas_src>
import functools

import jax
import jax.numpy as jnp
from jax.experimental import pallas as pl
from jax.experimental.pallas import tpu as pltpu


def _round_up(x, m):
    return ((x + m - 1) // m) * m


def _fused_dense_kernel(x_ref, w_ref, b_ref, o_ref, *, compute_dtype):
    """One batch tile: o = x @ W_total + b_total (f32 MXU accumulation)."""
    x = x_ref[...].astype(compute_dtype)          # in-kernel cast (VPU slack), if any
    w = w_ref[...].astype(compute_dtype)
    acc = jnp.dot(x, w, preferred_element_type=jnp.float32)
    o_ref[...] = (acc + b_ref[...].astype(jnp.float32)).astype(o_ref.dtype)


def dense_block_forward(x, weights_t, biases, *,
                        compute_dtype=jnp.float32, block_batch=1024):
    """Apply Dense_block: a chain of Linear layers (last one -> 1 unit).

    Args:
      x:          (batch, input_dim) float32.
      weights_t:  list of (in_f, out_f) float32 arrays (pre-transposed PyTorch weights).
      biases:     list of (1, out_f) float32 arrays.
      compute_dtype: matmul operand dtype inside the kernel (f32 default; the fused
                     chain is memory-bound on x, so bf16 buys nothing here).
      block_batch:   max batch tile size (multiple of 8).
    Returns:
      (batch, out_dim_of_last_layer) float32  — (batch, 1) for this module.
    """
    batch, in_dim = x.shape
    out_dtype = x.dtype

    # ---- Trace-time algebraic fusion of the activation-free Linear chain (f32). ----
    w_total = weights_t[0].astype(jnp.float32)          # (in_dim, d1)
    b_total = biases[0].astype(jnp.float32)             # (1, d1)
    for w_l, b_l in zip(weights_t[1:], biases[1:]):
        w_l = w_l.astype(jnp.float32)
        w_total = w_total @ w_l                          # (in_dim, d_l)
        b_total = b_total @ w_l + b_l.astype(jnp.float32)
    out_dim = w_total.shape[1]

    # ---- Batch tile selection: big tiles, but keep grid >= 2 when batch allows. ----
    padded = _round_up(batch, 8)
    tb = min(int(_round_up(block_batch, 8)), padded)
    if padded > 8 and (padded + tb - 1) // tb < 2:
        tb = _round_up((padded + 1) // 2, 8)             # split into >= 2 tiles (v7x megacore)
    grid = (pl.cdiv(batch, tb),)                          # ragged last tile handled by Pallas

    # ---- Block specs: x/out tiled over batch, fused params VMEM-resident. ----
    x_spec = pl.BlockSpec((tb, in_dim), lambda i: (i, 0))
    w_spec = pl.BlockSpec((in_dim, out_dim), lambda i: (0, 0))
    b_spec = pl.BlockSpec((1, out_dim), lambda i: (0, 0))
    out_spec = pl.BlockSpec((tb, out_dim), lambda i: (i, 0))

    # ---- VMEM budget (double-buffered x/out tiles + resident params + margin). ----
    x_bytes = tb * in_dim * x.dtype.itemsize
    out_bytes = tb * out_dim * jnp.dtype(out_dtype).itemsize
    param_bytes = w_total.size * 4 + b_total.size * 4
    vmem_limit = int(2 * (x_bytes + out_bytes) + 2 * param_bytes + (4 << 20))
    vmem_limit = max(min(vmem_limit, 48 << 20), 1 << 20)

    # ---- Cost estimate hint for XLA scheduling around the custom call. ----
    flops = 2 * batch * in_dim * out_dim
    bytes_accessed = (batch * in_dim * x.dtype.itemsize
                      + param_bytes
                      + batch * out_dim * jnp.dtype(out_dtype).itemsize)
    cost = pl.CostEstimate(flops=flops, transcendentals=0,
                           bytes_accessed=bytes_accessed)

    kernel = functools.partial(_fused_dense_kernel, compute_dtype=compute_dtype)

    y = pl.pallas_call(
        kernel,
        out_shape=jax.ShapeDtypeStruct((batch, out_dim), out_dtype),
        grid=grid,
        in_specs=[x_spec, w_spec, b_spec],
        out_specs=out_spec,
        compiler_params=pltpu.CompilerParams(
            dimension_semantics=("parallel",),
            vmem_limit_bytes=vmem_limit,
        ),
        cost_estimate=cost,
    )(x, w_total, b_total)

    return y


def init_dense_block_params(key, input_dim, hidden_dims):
    """Parameter init matching the PyTorch module's layer shapes.

    Linear(in_f, out_f): W is (out_f, in_f), b is (out_f,). We store W transposed as
    (in_f, out_f). Init mimics PyTorch's U(-1/sqrt(in_f), 1/sqrt(in_f)).
    """
    dims = []
    in_f = input_dim
    if hidden_dims:
        for h in hidden_dims:
            dims.append((in_f, h))
            in_f = h
    dims.append((in_f, 1))  # final Linear(in_features, 1)

    weights_t, biases = [], []
    for (fin, fout) in dims:
        key, kw, kb = jax.random.split(key, 3)
        bound = 1.0 / jnp.sqrt(jnp.float32(fin))
        w_t = jax.random.uniform(kw, (fin, fout), jnp.float32, -bound, bound)
        b = jax.random.uniform(kb, (1, fout), jnp.float32, -bound, bound)
        weights_t.append(w_t)
        biases.append(b)
    return weights_t, biases


def reference_forward(x, weights_t, biases):
    h = x
    for w, b in zip(weights_t, biases):
        h = h @ w + b
    return h


if __name__ == "__main__":
    key = jax.random.PRNGKey(0)

    input_dim = 32
    hidden_dims = [64, 32]

    key, kp = jax.random.split(key)
    weights_t, biases = init_dense_block_params(kp, input_dim, hidden_dims)

    # --- Test 1: small batch, single-tile grid, f32 compute, tight tolerance. ---
    key, kx = jax.random.split(key)
    x_small = jax.random.normal(kx, (8, input_dim), jnp.float32)
    y = dense_block_forward(x_small, weights_t, biases)
    y = jax.block_until_ready(y)
    y_ref = reference_forward(x_small, weights_t, biases)
    assert y.shape == (8, 1), y.shape
    assert jnp.allclose(y, y_ref, atol=1e-4, rtol=1e-4), (
        f"f32 max abs err = {jnp.max(jnp.abs(y - y_ref))}"
    )

    # --- Test 2: multi-tile grid with a ragged (non-multiple-of-tile) last batch tile. ---
    key, kx2 = jax.random.split(key)
    x_big = jax.random.normal(kx2, (300, input_dim), jnp.float32)
    y2 = dense_block_forward(x_big, weights_t, biases, block_batch=1024)
    y2 = jax.block_until_ready(y2)
    y2_ref = reference_forward(x_big, weights_t, biases)
    assert y2.shape == (300, 1), y2.shape
    assert jnp.allclose(y2, y2_ref, atol=1e-4, rtol=1e-4), (
        f"max abs err = {jnp.max(jnp.abs(y2 - y2_ref))}"
    )

    # --- Test 3: no hidden layers (Dense_block with empty hidden_dims). ---
    key, kp2 = jax.random.split(key)
    w0, b0 = init_dense_block_params(kp2, input_dim, [])
    y3 = dense_block_forward(x_small, w0, b0)
    y3 = jax.block_until_ready(y3)
    y3_ref = reference_forward(x_small, w0, b0)
    assert y3.shape == (8, 1), y3.shape
    assert jnp.allclose(y3, y3_ref, atol=1e-4, rtol=1e-4), (
        f"max abs err = {jnp.max(jnp.abs(y3 - y3_ref))}"
    )

    print("KERNEL_OK")
</pallas_src>

<mosaic_0001>
module attributes {stable_mosaic.version = 11 : i64} {
  func.func @_fused_dense_kernel(%arg0: i32, %arg1: memref<8x32xf32, #tpu.memory_space<vmem>>, %arg2: memref<32x1xf32, #tpu.memory_space<vmem>>, %arg3: memref<1x1xf32, #tpu.memory_space<vmem>>, %arg4: memref<8x1xf32, #tpu.memory_space<vmem>>) attributes {dimension_semantics = [#tpu.dimension_semantics<parallel>], iteration_bounds = array<i64: 1>, scalar_prefetch = 0 : i64, scratch_operands = 0 : i64, tpu.core_type = #tpu.core_type<tc>, window_params = [{transform_indices = @transform_0, window_bounds = array<i64: 8, 32>}, {pipeline_mode = #tpu.pipeline_mode<synchronous>, transform_indices = @transform_1, window_bounds = array<i64: 32, 1>}, {pipeline_mode = #tpu.pipeline_mode<synchronous>, transform_indices = @transform_2, window_bounds = array<i64: 1, 1>}, {transform_indices = @transform_3, window_bounds = array<i64: 8, 1>}]} {
    %c0 = arith.constant 0 : index
    %c0_0 = arith.constant 0 : index
    %0 = vector.load %arg1[%c0, %c0_0] : memref<8x32xf32, #tpu.memory_space<vmem>>, vector<8x32xf32>
    %c0_1 = arith.constant 0 : index
    %c0_2 = arith.constant 0 : index
    %1 = vector.load %arg2[%c0_1, %c0_2] : memref<32x1xf32, #tpu.memory_space<vmem>>, vector<32x1xf32>
    %cst = arith.constant dense<0.000000e+00> : vector<8x1xf32>
    %2 = tpu.matmul %0, %1, %cst {dimension_numbers = #tpu.dot_dimension_numbers<[1], [0], [0], [1], [0, 0, 1, 1], [], []>} : vector<8x32xf32>, vector<32x1xf32>, vector<8x1xf32> -> vector<8x1xf32>
    %c0_3 = arith.constant 0 : index
    %c0_4 = arith.constant 0 : index
    %3 = vector.load %arg3[%c0_3, %c0_4] : memref<1x1xf32, #tpu.memory_space<vmem>>, vector<1x1xf32>
    %4 = vector.broadcast %3 : vector<1x1xf32> to vector<8x1xf32>
    %5 = arith.addf %2, %4 : vector<8x1xf32>
    %c0_5 = arith.constant 0 : index
    %c0_6 = arith.constant 0 : index
    %6 = vector.load %arg4[%c0_5, %c0_6] : memref<8x1xf32, #tpu.memory_space<vmem>>, vector<8x1xf32>
    tpu.vector_store %arg4[%c0_5, %c0_6], %5 {strides = array<i32>} : memref<8x1xf32, #tpu.memory_space<vmem>>, vector<8x1xf32>,
    return
  }
  func.func @transform_0(%arg0: i32) -> (i32, i32) {
    %c0_i32 = arith.constant 0 : i32
    %c0_i32_0 = arith.constant 0 : i32
    return %arg0, %c0_i32 : i32, i32
  }
  func.func @transform_1(%arg0: i32) -> (i32, i32) {
    %c0_i32 = arith.constant 0 : i32
    %c0_i32_0 = arith.constant 0 : i32
    %c0_i32_1 = arith.constant 0 : i32
    return %c0_i32, %c0_i32_0 : i32, i32
  }
  func.func @transform_2(%arg0: i32) -> (i32, i32) {
    %c0_i32 = arith.constant 0 : i32
    %c0_i32_0 = arith.constant 0 : i32
    %c0_i32_1 = arith.constant 0 : i32
    return %c0_i32, %c0_i32_0 : i32, i32
  }
  func.func @transform_3(%arg0: i32) -> (i32, i32) {
    %c0_i32 = arith.constant 0 : i32
    %c0_i32_0 = arith.constant 0 : i32
    return %arg0, %c0_i32 : i32, i32
  }
}

</mosaic_0001>

<llo_original>
// kernel: tpu_custom_call.1
$region0: #{tpu_custom_call.1}
  #allocation0 [shape = 'u32[]', space=smem, size = 0x4, offset = 0x4, fixed_abs, tag = 'smem constant byte address 0x4 - core index']
  #allocation1 [shape = 'u32[144,128]{1,0:T(1,128)}', space=vmem, size = 0x12000, scoped, tag = 'internal scratch']
  #allocation2 [shape = 'f32[1,1]{1,0:T(1,128)S(1)}', space=vmem, size = 0x200, scoped, tag = 'scoped memory for tpu_custom_call.1']
  %s0 = inlined_call_operand.vmem [shape: f32[8,32], index: 0, kind: input, shape index: {}]
  %s1 = inlined_call_operand.vmem [shape: f32[32,1], index: 1, kind: input, shape index: {}]
  %s2 = inlined_call_operand.<no memory space> [shape: f32[1,1], index: 2, kind: input, shape index: {}]
  %s3 = inlined_call_operand.vmem [shape: f32[8,1], index: 3, kind: output, shape index: {}]
  %s4 = sld [smem:[#allocation0]]
  $region22: #{tpu_custom_call.1} parent=0
    _
  %s6 = ssub.s32 1, %s4
  %s7 = scalar_select 0, %s6, %s4
  %v8 = vstv %s2
  %9 = vst [vmem:[#allocation2] sm:$0x1] %v8
  // Predicated region
  $region2: #{tpu_custom_call.1} parent=0 // pred_check
    _
  $region3: #{tpu_custom_call.1} parent=0 // pred_check_branch
    %11 = sbr.rel (0) target = $region5
  $region4: #{tpu_custom_call.1} parent=0 // pred_region
    _
  $region5: #{tpu_custom_call.1} parent=0 // pred_fallthru
    _
  // Predicated region
  $region6: #{tpu_custom_call.1} parent=0 // pred_check
    _
  $region7: #{tpu_custom_call.1} parent=0 // pred_check_branch
    %13 = sbr.rel (0) target = $region9
  $region8: #{tpu_custom_call.1} parent=0 // pred_region
    _
  $region9: #{tpu_custom_call.1} parent=0 // pred_fallthru
    _
  // Predicated region
  $region10: #{tpu_custom_call.1} parent=0 // pred_check
    _
  $region11: #{tpu_custom_call.1} parent=0 // pred_check_branch
    %15 = sbr.rel (0) target = $region13
  $region12: #{tpu_custom_call.1} parent=0 // pred_region
    _
  $region13: #{tpu_custom_call.1} parent=0 // pred_fallthru
    _
  %v16 = vld [vmem:[%s0] sm:$0xff]
  %v17 = vld [vmem:[%s1] sm:$0xff]
  %v18 = vld [vmem:[%s1 + $0x8] sm:$0xff]
  %v19 = vld [vmem:[%s1 + $0x10] sm:$0xff]
  %v20 = vld [vmem:[%s1 + $0x18] sm:$0xff]
  %v21 = vld [vmem:[#allocation2] sm:$0x1]
  %v23 = vlaneseq
  %v24 = vshrl.u32 %v23, 7
  %v25 = vsub.s32 0, %v24
  %v26 = vrot.slane %v21, %v25
  %vm28 = vcmask 261120
  %v30 = vsel %vm28, %v16, 0
  %32 = vmatprep.subr.mxu0 0.0
  %33 = vmatpush1.msra.mxu0 %v17
  %34 = vmatprep.subr.mxu0 0.0
  %35 = vmatpush1.msra.mxu0 %v18
  %36 = vmatprep.subr.mxu0 0.0
  %37 = vmatpush1.msra.mxu0 %v19
  %38 = vmatprep.subr.mxu0 0.0
  %39 = vmatpush1.msra.mxu0 %v20
  %40 = vmatprep.subr.mxu0 0.0
  %41 = vmatpush1.msra.mxu0 0.0
  %42 = vmatprep.subr.mxu0 0.0
  %43 = vmatpush1.msra.mxu0 0.0
  %44 = vmatprep.subr.mxu0 0.0
  %45 = vmatpush1.msra.mxu0 0.0
  %46 = vmatprep.subr.mxu0 0.0
  %47 = vmatpush1.msra.mxu0 0.0
  %48 = vmatprep.subr.mxu0 0.0
  %49 = vmatpush1.msra.mxu0 0.0
  %50 = vmatprep.subr.mxu0 0.0
  %51 = vmatpush1.msra.mxu0 0.0
  %52 = vmatprep.subr.mxu0 0.0
  %53 = vmatpush1.msra.mxu0 0.0
  %54 = vmatprep.subr.mxu0 0.0
  %55 = vmatpush1.msra.mxu0 0.0
  %56 = vmatprep.subr.mxu0 0.0
  %57 = vmatpush1.msra.mxu0 0.0
  %58 = vmatprep.subr.mxu0 0.0
  %59 = vmatpush1.msra.mxu0 0.0
  %60 = vmatprep.subr.mxu0 0.0
  %61 = vmatpush1.msra.mxu0 0.0
  %62 = vmatprep.subr.mxu0 0.0
  %63 = vmatpush1.msra.mxu0 0.0
  %64 = vmatprep.subr.mxu0 0.0
  %65 = vmatpush1.msra.mxu0 0.0
  %66 = vmatprep.subr.mxu0 0.0
  %67 = vmatpush1.msra.mxu0 0.0
  %68 = vmatprep.subr.mxu0 0.0
  %69 = vmatpush1.msra.mxu0 0.0
  %70 = vmatprep.subr.mxu0 0.0
  %71 = vmatpush1.msra.mxu0 0.0
  %72 = vmatprep.subr.mxu0 0.0
  %73 = vmatpush1.msra.mxu0 0.0
  %74 = vmatprep.subr.mxu0 0.0
  %75 = vmatpush1.msra.mxu0 0.0
  %76 = vmatprep.subr.mxu0 0.0
  %77 = vmatpush1.msra.mxu0 0.0
  %78 = vmatprep.subr.mxu0 0.0
  %79 = vmatpush1.msra.mxu0 0.0
  %80 = vmatprep.subr.mxu0 0.0
  %81 = vmatpush1.msra.mxu0 0.0
  %82 = vmatprep.subr.mxu0 0.0
  %83 = vmatpush1.msra.mxu0 0.0
  %84 = vmatprep.subr.mxu0 0.0
  %85 = vmatpush1.msra.mxu0 0.0
  %86 = vmatprep.subr.mxu0 0.0
  %87 = vmatpush1.msra.mxu0 0.0
  %88 = vmatprep.subr.mxu0 0.0
  %89 = vmatpush1.msra.mxu0 0.0
  %90 = vmatprep.subr.mxu0 0.0
  %91 = vmatpush1.msra.mxu0 0.0
  %92 = vmatprep.subr.mxu0 0.0
  %93 = vmatpush1.msra.mxu0 0.0
  %94 = vmatprep.subr.mxu0 0.0
  %95 = vmatpush1.msra.mxu0 0.0
  %96 = vmatprep.mubr.f32.mxu0 0.0
  %97 = vmatmul.mubr.f32.gmra.mrb[0].mxu0 %v30
  %v98 = vpop.f32.mrb[0].mxu0
  %v99 = vadd.f32 %v26, %v98
  %v100 = vpop.f32.mrb[0].mxu0
  %101 = vdwg.mxu0
  %vm102 = vcmask 7168
  %103 = vst.msk [vmem:[%s3] sm:$0xff] %vm102, %v99
  // Predicated region
  $region14: #{tpu_custom_call.1} parent=0 // pred_check
    _
  $region15: #{tpu_custom_call.1} parent=0 // pred_check_branch
    %105 = sbr.rel (0) target = $region17
  $region16: #{tpu_custom_call.1} parent=0 // pred_region
    _
  $region17: #{tpu_custom_call.1} parent=0 // pred_fallthru
    _
  // Predicated region
  $region18: #{tpu_custom_call.1} parent=0 // pred_check
    _
  $region19: #{tpu_custom_call.1} parent=0 // pred_check_branch
    %107 = sbr.rel (0) target = $region21
  $region20: #{tpu_custom_call.1} parent=0 // pred_region
    _
  $region21: #{tpu_custom_call.1} parent=0 // pred_fallthru
    _

</llo_original>
